<compile_context>
chip_gen: v7x
topology: tpu7x:2x2x1
jax: 0.10.0
libtpu: 0.0.40
codegen_flags: <defaults>
</compile_context>

<pallas_src>
import functools

import jax
import jax.numpy as jnp
from jax.experimental import pallas as pl
from jax.experimental.pallas import tpu as pltpu


# ---------------------------------------------------------------------------
# Small-D path: a single fused kernel, no grid, everything resident in VMEM.
# ---------------------------------------------------------------------------
def _dvp_fused_kernel(x_ref, w1c_ref, b1c_ref, w2_ref, b2_ref, o_ref):
    """Both heads in one shot.

    x_ref  : (M, D)    f32  (cast to bf16 in-kernel)
    w1c_ref: (D, 2D)   bf16 [bev | fv] layer-1 weights, (in, out) layout
    b1c_ref: (1, 2D)   f32
    w2_ref : (2, D, D) bf16 per-head layer-2 weights, (in, out) layout
    b2_ref : (2, 1, D) f32
    o_ref  : (2, M, D) out dtype
    """
    D = w2_ref.shape[-1]
    x = x_ref[...].astype(jnp.bfloat16)
    # Layer 1, both heads fused along the output axis: (M, 2D).
    h = jnp.dot(x, w1c_ref[...], preferred_element_type=jnp.float32)
    h = jnp.maximum(h + b1c_ref[...], 0.0)
    # Layer 2, per head (D is a multiple of 128 here, so the slice is lane-aligned).
    h_bev = h[:, :D].astype(jnp.bfloat16)
    h_fv = h[:, D:].astype(jnp.bfloat16)
    y_bev = jnp.dot(h_bev, w2_ref[0], preferred_element_type=jnp.float32)
    y_fv = jnp.dot(h_fv, w2_ref[1], preferred_element_type=jnp.float32)
    o_ref[0] = jnp.maximum(y_bev + b2_ref[0], 0.0).astype(o_ref.dtype)
    o_ref[1] = jnp.maximum(y_fv + b2_ref[1], 0.0).astype(o_ref.dtype)


def _vmem_budget_bytes():
    """Generation-aware scoped-VMEM budget with headroom for Mosaic scratch."""
    cap = 64 * 1024 * 1024              # most conservative (v7x: 64 MiB / TC)
    try:
        cap = int(pltpu.get_tpu_info().vmem_capacity_bytes)
    except Exception:
        pass
    return (cap * 3) // 4               # ~25% headroom (scratch, sems, buffers)


def _fused_resident_bytes(M, D, out_itemsize):
    return (M * D * 4                   # x (f32)
            + 8 * D * D                 # w1cat + w2 stacked (bf16)
            + 16 * D                    # biases (f32)
            + 8 * M * D                 # layer-1 activations (f32)
            + 2 * M * D * out_itemsize)  # output


def _run_fused(x2d, params, out_dtype):
    """x2d: (M, D) f32.  Returns (2, M, D) out_dtype."""
    M, D = x2d.shape
    out_itemsize = jnp.dtype(out_dtype).itemsize
    resident = _fused_resident_bytes(M, D, out_itemsize)

    # Only raise the scoped-VMEM limit when the resident footprint actually
    # exceeds the smallest default (16 MiB on v5e); never above the budget.
    vmem_limit = None
    need = resident + (2 << 20)
    if need > 16 * 1024 * 1024:
        vmem_limit = int(min(need, _vmem_budget_bytes()))

    cost = pl.CostEstimate(
        flops=2 * 2 * 2 * M * D * D,          # 2 heads x 2 layers x 2*M*D*D
        transcendentals=0,
        bytes_accessed=int(M * D * 4 + 8 * D * D + 16 * D
                           + 2 * M * D * out_itemsize),
    )

    return pl.pallas_call(
        _dvp_fused_kernel,
        out_shape=jax.ShapeDtypeStruct((2, M, D), out_dtype),
        compiler_params=pltpu.CompilerParams(vmem_limit_bytes=vmem_limit),
        cost_estimate=cost,
    )(x2d, params["w1_cat"], params["b1_cat"], params["w2_s"], params["b2_s"])


# ---------------------------------------------------------------------------
# Large-D fallback: N/K-tiled linear + ReLU with a VMEM f32 accumulator.
# ---------------------------------------------------------------------------
def _tiled_linear_relu_kernel(x_ref, w_ref, b_ref, o_ref, acc_ref):
    k = pl.program_id(2)

    @pl.when(k == 0)
    def _():
        acc_ref[...] = jnp.zeros_like(acc_ref)

    acc_ref[...] += jnp.dot(x_ref[...].astype(jnp.bfloat16), w_ref[...],
                            preferred_element_type=jnp.float32)

    @pl.when(k == pl.num_programs(2) - 1)
    def _():
        o_ref[...] = jnp.maximum(acc_ref[...] + b_ref[...], 0.0).astype(o_ref.dtype)


def _pick_tile(n, cap=512):
    for t in (512, 256, 128):
        if t <= cap and n % t == 0:
            return t
    # TODO(synk): for very large D not a multiple of 128 (e.g. dim=25 -> D=625)
    # pad the weight matrices to the next 128 multiple instead of falling back
    # to full-extent blocks.
    return n


def _tiled_linear_relu(x3, w_s, b_s, out_dtype, *, tn, tk):
    """relu(x @ W + b) per head, N/K-tiled with a VMEM f32 accumulator.

    x3 : (1 or 2, M, K)  shared (1) or per-head (2) input, f32 or bf16
    w_s: (2, K, N) bf16  (in, out) layout
    b_s: (2, 1, N) f32
    """
    hx, M, K = x3.shape
    nh, _, N = w_s.shape
    shared_x = hx == 1
    x_map = ((lambda h, j, k: (0, 0, k)) if shared_x
             else (lambda h, j, k: (h, 0, k)))
    grid = (nh, N // tn, K // tk)

    cost = pl.CostEstimate(
        flops=2 * nh * M * K * N,
        transcendentals=0,
        bytes_accessed=int(hx * M * K * x3.dtype.itemsize
                           + nh * K * N * 2 + nh * N * 4
                           + nh * M * N * jnp.dtype(out_dtype).itemsize),
    )

    return pl.pallas_call(
        _tiled_linear_relu_kernel,
        out_shape=jax.ShapeDtypeStruct((nh, M, N), out_dtype),
        grid=grid,
        in_specs=[
            pl.BlockSpec((None, M, tk), x_map),
            pl.BlockSpec((None, tk, tn), lambda h, j, k: (h, k, j)),
            pl.BlockSpec((None, 1, tn), lambda h, j, k: (h, 0, j)),
        ],
        out_specs=pl.BlockSpec((None, M, tn), lambda h, j, k: (h, 0, j)),
        scratch_shapes=[pltpu.VMEM((M, tn), jnp.float32)],
        compiler_params=pltpu.CompilerParams(
            dimension_semantics=("parallel", "parallel", "arbitrary")),
        cost_estimate=cost,
    )(x3, w_s, b_s)


def _run_tiled(x2d, params, out_dtype, *, tn=None, tk=None):
    """x2d: (M, D) f32.  Returns (2, M, D) out_dtype."""
    _, D = x2d.shape
    tn = tn or _pick_tile(D)
    tk = tk or _pick_tile(D)
    # Layer 1: x shared between heads; kernel casts f32 -> bf16 per K-tile.
    h = _tiled_linear_relu(x2d[None], params["w1_s"], params["b1_s"],
                           jnp.bfloat16, tn=tn, tk=tk)          # (2, M, D) bf16
    # Layer 2: per-head activations.
    return _tiled_linear_relu(h, params["w2_s"], params["b2_s"],
                              out_dtype, tn=tn, tk=tk)          # (2, M, D)


# ---------------------------------------------------------------------------
# Public forward.
# ---------------------------------------------------------------------------
@functools.partial(jax.jit, static_argnames=("dim", "out_dtype"))
def decouple_view_projection(x, kernel_params, dim, out_dtype=jnp.float32):
    """x: (B, C, H, W) with H == W == dim.  Returns (bev, fv)."""
    B, C, H, W = x.shape
    D = dim * dim
    M = B * C
    x2d = x.reshape(M, D)      # stays f32; the kernel casts to bf16 on the VPU

    out_itemsize = jnp.dtype(out_dtype).itemsize
    if _fused_resident_bytes(M, D, out_itemsize) <= _vmem_budget_bytes():
        out = _run_fused(x2d, kernel_params, out_dtype)
    else:
        out = _run_tiled(x2d, kernel_params, out_dtype)

    bev = out[0].reshape(B, C, dim, dim)
    fv = out[1].reshape(B, C, dim, dim)
    return bev, fv


# ---------------------------------------------------------------------------
# Parameter init (PyTorch nn.Linear convention) + one-time kernel packing.
# ---------------------------------------------------------------------------
def init_linear_params(key, in_features, out_features):
    """Mimics torch.nn.Linear default init (uniform +-1/sqrt(in))."""
    k_w, k_b = jax.random.split(key)
    bound = 1.0 / jnp.sqrt(jnp.float32(in_features))
    w = jax.random.uniform(k_w, (out_features, in_features), jnp.float32,
                           minval=-bound, maxval=bound)
    b = jax.random.uniform(k_b, (out_features,), jnp.float32,
                           minval=-bound, maxval=bound)
    return w, b


def init_transform_module(key, dim):
    d2 = dim * dim
    k1, k2 = jax.random.split(key)
    w1, b1 = init_linear_params(k1, d2, d2)
    w2, b2 = init_linear_params(k2, d2, d2)
    return {"w1": w1, "b1": b1, "w2": w2, "b2": b2}


def prepare_kernel_params(bev_params, fv_params, dim):
    """One-time packing (outside the hot path): pre-transpose to (in, out),
    cast weights to bf16, and build both the fused small-D layout (layer-1
    weights concatenated along the output axis) and the stacked per-head
    layout used by the large-D tiled path."""
    D = dim * dim

    def stack(name):
        return jnp.stack([bev_params[name], fv_params[name]], axis=0)

    w1_s = jnp.transpose(stack("w1"), (0, 2, 1)).astype(jnp.bfloat16)   # (2,D,D)
    w2_s = jnp.transpose(stack("w2"), (0, 2, 1)).astype(jnp.bfloat16)   # (2,D,D)
    b1_s = stack("b1").reshape(2, 1, D).astype(jnp.float32)             # (2,1,D)
    b2_s = stack("b2").reshape(2, 1, D).astype(jnp.float32)             # (2,1,D)

    w1_cat = jnp.concatenate([w1_s[0], w1_s[1]], axis=1)                # (D,2D)
    b1_cat = jnp.concatenate([b1_s[0], b1_s[1]], axis=1)                # (1,2D)

    return {"w1_s": w1_s, "b1_s": b1_s, "w2_s": w2_s, "b2_s": b2_s,
            "w1_cat": w1_cat, "b1_cat": b1_cat}


# ---------------------------------------------------------------------------
# References.
# ---------------------------------------------------------------------------
def reference_f32(x, bev_params, fv_params, dim):
    """Pure-JAX f32 reference of the PyTorch forward."""
    B, C, H, W = x.shape
    D = dim * dim
    x2d = x.reshape(B, C, D).astype(jnp.float32)

    def tm(p):
        h = jnp.maximum(x2d @ p["w1"].T + p["b1"], 0.0)
        y = jnp.maximum(h @ p["w2"].T + p["b2"], 0.0)
        return y.reshape(B, C, dim, dim)

    return tm(bev_params), tm(fv_params)


def reference_bf16(x, bev_params, fv_params, dim):
    """Reference matching the kernel's mixed precision: bf16-rounded operands,
    f32 accumulation / bias / ReLU."""
    B, C, H, W = x.shape
    D = dim * dim
    r = lambda a: a.astype(jnp.bfloat16).astype(jnp.float32)
    x2d = r(x.reshape(B, C, D))

    def tm(p):
        h = jnp.maximum(x2d @ r(p["w1"]).T + p["b1"], 0.0)
        y = jnp.maximum(r(h) @ r(p["w2"]).T + p["b2"], 0.0)
        return y.reshape(B, C, dim, dim)

    return tm(bev_params), tm(fv_params)


if __name__ == "__main__":
    key = jax.random.PRNGKey(0)
    k_x, k_bev, k_fv = jax.random.split(key, 3)

    # Small shapes consistent with the module: in_dim=16 -> spatial 16x16,
    # batch=2, channels=4.
    dim = 16
    B, C = 2, 4
    x = jax.random.normal(k_x, (B, C, dim, dim), jnp.float32)

    bev_params = init_transform_module(k_bev, dim)
    fv_params = init_transform_module(k_fv, dim)
    kernel_params = prepare_kernel_params(bev_params, fv_params, dim)

    # Default (small-D fused, single-step) path.
    bev, fv = decouple_view_projection(x, kernel_params, dim)
    jax.block_until_ready((bev, fv))
    assert bev.shape == (B, C, dim, dim) and fv.shape == (B, C, dim, dim)

    # Tight check against a precision-matched (bf16-operand) reference.
    bev_r16, fv_r16 = reference_bf16(x, bev_params, fv_params, dim)
    assert jnp.allclose(bev, bev_r16, atol=3e-3, rtol=3e-3), \
        float(jnp.max(jnp.abs(bev - bev_r16)))
    assert jnp.allclose(fv, fv_r16, atol=3e-3, rtol=3e-3), \
        float(jnp.max(jnp.abs(fv - fv_r16)))

    # Loose check against the full-f32 PyTorch-semantics reference.
    bev_r32, fv_r32 = reference_f32(x, bev_params, fv_params, dim)
    assert jnp.allclose(bev, bev_r32, atol=5e-2, rtol=5e-2)
    assert jnp.allclose(fv, fv_r32, atol=5e-2, rtol=5e-2)

    # Also exercise the large-D N/K-tiled fallback at small shapes by forcing
    # 128x128 tiles (grid (2, 2, 2)) and check it matches.
    out_t = _run_tiled(x.reshape(B * C, dim * dim).astype(jnp.float32),
                       kernel_params, jnp.float32, tn=128, tk=128)
    jax.block_until_ready(out_t)
    bev_t = out_t[0].reshape(B, C, dim, dim)
    fv_t = out_t[1].reshape(B, C, dim, dim)
    assert jnp.allclose(bev_t, bev_r16, atol=3e-3, rtol=3e-3), \
        float(jnp.max(jnp.abs(bev_t - bev_r16)))
    assert jnp.allclose(fv_t, fv_r16, atol=3e-3, rtol=3e-3), \
        float(jnp.max(jnp.abs(fv_t - fv_r16)))

    print("KERNEL_OK")
</pallas_src>

<mosaic_0001>
module attributes {stable_mosaic.version = 11 : i64} {
  func.func @_dvp_fused_kernel(%arg0: memref<8x256xf32, #tpu.memory_space<vmem>>, %arg1: memref<256x512xbf16, #tpu.memory_space<vmem>>, %arg2: memref<1x512xf32, #tpu.memory_space<vmem>>, %arg3: memref<2x256x256xbf16, #tpu.memory_space<vmem>>, %arg4: memref<2x1x256xf32, #tpu.memory_space<vmem>>, %arg5: memref<2x8x256xf32, #tpu.memory_space<vmem>>) attributes {dimension_semantics = [], scalar_prefetch = 0 : i64, scratch_operands = 0 : i64, tpu.core_type = #tpu.core_type<tc>} {
    %c0 = arith.constant 0 : index
    %c0_0 = arith.constant 0 : index
    %0 = vector.load %arg0[%c0, %c0_0] : memref<8x256xf32, #tpu.memory_space<vmem>>, vector<8x256xf32>
    %1 = arith.truncf %0 : vector<8x256xf32> to vector<8x256xbf16>
    %c0_1 = arith.constant 0 : index
    %c0_2 = arith.constant 0 : index
    %2 = vector.load %arg1[%c0_1, %c0_2] : memref<256x512xbf16, #tpu.memory_space<vmem>>, vector<256x512xbf16>
    %cst = arith.constant dense<0.000000e+00> : vector<8x512xf32>
    %3 = tpu.matmul %1, %2, %cst {dimension_numbers = #tpu.dot_dimension_numbers<[1], [0], [0], [1], [0, 0, 1, 1], [], []>} : vector<8x256xbf16>, vector<256x512xbf16>, vector<8x512xf32> -> vector<8x512xf32>
    %c0_3 = arith.constant 0 : index
    %c0_4 = arith.constant 0 : index
    %4 = vector.load %arg2[%c0_3, %c0_4] : memref<1x512xf32, #tpu.memory_space<vmem>>, vector<1x512xf32>
    %5 = vector.broadcast %4 : vector<1x512xf32> to vector<8x512xf32>
    %6 = arith.addf %3, %5 : vector<8x512xf32>
    %cst_5 = arith.constant 0.000000e+00 : f32
    %7 = vector.broadcast %cst_5 : f32 to vector<8x512xf32>
    %8 = arith.maximumf %6, %7 : vector<8x512xf32>
    %9 = vector.extract_strided_slice %8 {offsets = [0, 0], sizes = [8, 256], strides = [1, 1]} : vector<8x512xf32> to vector<8x256xf32>
    %10 = arith.truncf %9 : vector<8x256xf32> to vector<8x256xbf16>
    %11 = vector.extract_strided_slice %8 {offsets = [0, 256], sizes = [8, 256], strides = [1, 1]} : vector<8x512xf32> to vector<8x256xf32>
    %12 = arith.truncf %11 : vector<8x256xf32> to vector<8x256xbf16>
    %c0_6 = arith.constant 0 : index
    %c0_7 = arith.constant 0 : index
    %c0_8 = arith.constant 0 : index
    %13 = vector.load %arg3[%c0_6, %c0_7, %c0_8] : memref<2x256x256xbf16, #tpu.memory_space<vmem>>, vector<1x256x256xbf16>
    %14 = vector.shape_cast %13 : vector<1x256x256xbf16> to vector<256x256xbf16>
    %cst_9 = arith.constant dense<0.000000e+00> : vector<8x256xf32>
    %15 = tpu.matmul %10, %14, %cst_9 {dimension_numbers = #tpu.dot_dimension_numbers<[1], [0], [0], [1], [0, 0, 1, 1], [], []>} : vector<8x256xbf16>, vector<256x256xbf16>, vector<8x256xf32> -> vector<8x256xf32>
    %c1 = arith.constant 1 : index
    %c0_10 = arith.constant 0 : index
    %c0_11 = arith.constant 0 : index
    %16 = vector.load %arg3[%c1, %c0_10, %c0_11] : memref<2x256x256xbf16, #tpu.memory_space<vmem>>, vector<1x256x256xbf16>
    %17 = vector.shape_cast %16 : vector<1x256x256xbf16> to vector<256x256xbf16>
    %cst_12 = arith.constant dense<0.000000e+00> : vector<8x256xf32>
    %18 = tpu.matmul %12, %17, %cst_12 {dimension_numbers = #tpu.dot_dimension_numbers<[1], [0], [0], [1], [0, 0, 1, 1], [], []>} : vector<8x256xbf16>, vector<256x256xbf16>, vector<8x256xf32> -> vector<8x256xf32>
    %c0_13 = arith.constant 0 : index
    %c0_14 = arith.constant 0 : index
    %c0_15 = arith.constant 0 : index
    %19 = vector.load %arg4[%c0_13, %c0_14, %c0_15] : memref<2x1x256xf32, #tpu.memory_space<vmem>>, vector<1x1x256xf32>
    %20 = vector.shape_cast %19 : vector<1x1x256xf32> to vector<1x256xf32>
    %21 = vector.broadcast %20 : vector<1x256xf32> to vector<8x256xf32>
    %22 = arith.addf %15, %21 : vector<8x256xf32>
    %cst_16 = arith.constant 0.000000e+00 : f32
    %23 = vector.broadcast %cst_16 : f32 to vector<8x256xf32>
    %24 = arith.maximumf %22, %23 : vector<8x256xf32>
    %c0_17 = arith.constant 0 : index
    %c0_18 = arith.constant 0 : index
    %c0_19 = arith.constant 0 : index
    %25 = vector.load %arg5[%c0_17, %c0_18, %c0_19] : memref<2x8x256xf32, #tpu.memory_space<vmem>>, vector<1x8x256xf32>
    %26 = vector.shape_cast %25 : vector<1x8x256xf32> to vector<8x256xf32>
    %27 = vector.shape_cast %24 : vector<8x256xf32> to vector<1x8x256xf32>
    tpu.vector_store %arg5[%c0_17, %c0_18, %c0_19], %27 {strides = array<i32>} : memref<2x8x256xf32, #tpu.memory_space<vmem>>, vector<1x8x256xf32>,
    %c1_20 = arith.constant 1 : index
    %c0_21 = arith.constant 0 : index
    %c0_22 = arith.constant 0 : index
    %28 = vector.load %arg4[%c1_20, %c0_21, %c0_22] : memref<2x1x256xf32, #tpu.memory_space<vmem>>, vector<1x1x256xf32>
    %29 = vector.shape_cast %28 : vector<1x1x256xf32> to vector<1x256xf32>
    %30 = vector.broadcast %29 : vector<1x256xf32> to vector<8x256xf32>
    %31 = arith.addf %18, %30 : vector<8x256xf32>
    %cst_23 = arith.constant 0.000000e+00 : f32
    %32 = vector.broadcast %cst_23 : f32 to vector<8x256xf32>
    %33 = arith.maximumf %31, %32 : vector<8x256xf32>
    %c1_24 = arith.constant 1 : index
    %c0_25 = arith.constant 0 : index
    %c0_26 = arith.constant 0 : index
    %34 = vector.load %arg5[%c1_24, %c0_25, %c0_26] : memref<2x8x256xf32, #tpu.memory_space<vmem>>, vector<1x8x256xf32>
    %35 = vector.shape_cast %34 : vector<1x8x256xf32> to vector<8x256xf32>
    %36 = vector.shape_cast %33 : vector<8x256xf32> to vector<1x8x256xf32>
    tpu.vector_store %arg5[%c1_24, %c0_25, %c0_26], %36 {strides = array<i32>} : memref<2x8x256xf32, #tpu.memory_space<vmem>>, vector<1x8x256xf32>,
    return
  }
}

</mosaic_0001>

<llo_original>
// kernel: squeeze.3
$region0: #{squeeze.3}
  %s0 = inlined_call_operand.vmem [shape: f32[1,8,256], index: 0, kind: input, shape index: {}]
  %s1 = inlined_call_operand.hbm [shape: f32[2,4,16,16], index: 1, kind: output, shape index: {}]
  $region1: #{squeeze.3} parent=0
    #allocation0 [shape = 'u8[65536]{0}', space=vmem, size = 0x10000, scoped, tag = 'operand span for operand 1']
    #allocation1 [shape = 's32[1]{0}', space=sflag, size = 0x4, scoped, tag = 'scoped memory for squeeze.3']
    %2 = vsyncpa [#allocation1], 0
    %v3 = vld [vmem:[%s0] sm:$0xff]
    %vm4 = vcmask 130048
    %5 = vst.msk [vmem:[#allocation0] ss:$16 sm:$0x3] %vm4, %v3
    %6 = vst.msk [vmem:[#allocation0] ss:$16 sm:$0xc] %vm4, %v3
    %7 = vst.msk [vmem:[#allocation0] ss:$16 sm:$0x30] %vm4, %v3
    %8 = vst.msk [vmem:[#allocation0] ss:$16 sm:$0xc0] %vm4, %v3
    %s9 = scalar_lea.vmem %s0, 8
    %v10 = vld [vmem:[%s9] sm:$0xff]
    %vm11 = vcmask 130048
    %s12 = scalar_lea.vmem [#allocation0], 8
    %13 = vst.msk [vmem:[%s12] ss:$16 sm:$0x3] %vm11, %v10
    %s14 = scalar_lea.vmem [#allocation0], 8
    %15 = vst.msk [vmem:[%s14] ss:$16 sm:$0xc] %vm11, %v10
    %s16 = scalar_lea.vmem [#allocation0], 8
    %17 = vst.msk [vmem:[%s16] ss:$16 sm:$0x30] %vm11, %v10
    %s18 = scalar_lea.vmem [#allocation0], 8
    %19 = vst.msk [vmem:[%s18] ss:$16 sm:$0xc0] %vm11, %v10
    %v20 = vld.sshfl [vmem:[%s0] sm:$0xff pattern:$0xb3a29180]
    %21 = vrot.lane.b32.xlu0 %v20, 112
    %v22 = vpop.permute.xlu0 %21
    %vm23 = vcmask 130048
    %s24 = scalar_lea.vmem [#allocation0], 1
    %25 = vst.msk [vmem:[%s24] ss:$8 sm:$0xf] %vm23, %v22
    %s26 = scalar_lea.vmem [#allocation0], 1
    %27 = vst.msk [vmem:[%s26] ss:$8 sm:$0xf0] %vm23, %v22
    %s28 = scalar_lea.vmem %s0, 4
    %v29 = vld.sshfl [vmem:[%s28] sm:$0xff pattern:$0xb3a29180]
    %30 = vrot.lane.b32.xlu0 %v29, 112
    %v31 = vpop.permute.xlu0 %30
    %vm32 = vcmask 130048
    %s33 = scalar_lea.vmem [#allocation0], 65
    %34 = vst.msk [vmem:[%s33] ss:$8 sm:$0xf] %vm32, %v31
    %s35 = scalar_lea.vmem [#allocation0], 65
    %36 = vst.msk [vmem:[%s35] ss:$8 sm:$0xf0] %vm32, %v31
    %v37 = vld.sshfl [vmem:[%s0] sm:$0xff pattern:$0xb3a29180]
    %38 = vrot.lane.b32.xlu0 %v37, 96
    %v39 = vpop.permute.xlu0 %38
    %vm40 = vcmask 130048
    %s41 = scalar_lea.vmem [#allocation0], 2
    %42 = vst.msk [vmem:[%s41] ss:$8 sm:$0xf] %vm40, %v39
    %s43 = scalar_lea.vmem [#allocation0], 2
    %44 = vst.msk [vmem:[%s43] ss:$8 sm:$0xf0] %vm40, %v39
    %s45 = scalar_lea.vmem %s0, 4
    %v46 = vld.sshfl [vmem:[%s45] sm:$0xff pattern:$0xb3a29180]
    %47 = vrot.lane.b32.xlu0 %v46, 96
    %v48 = vpop.permute.xlu0 %47
    %vm49 = vcmask 130048
    %s50 = scalar_lea.vmem [#allocation0], 66
    %51 = vst.msk [vmem:[%s50] ss:$8 sm:$0xf] %vm49, %v48
    %s52 = scalar_lea.vmem [#allocation0], 66
    %53 = vst.msk [vmem:[%s52] ss:$8 sm:$0xf0] %vm49, %v48
    %v54 = vld.sshfl [vmem:[%s0] sm:$0xff pattern:$0xb3a29180]
    %55 = vrot.lane.b32.xlu0 %v54, 80
    %v56 = vpop.permute.xlu0 %55
    %vm57 = vcmask 130048
    %s58 = scalar_lea.vmem [#allocation0], 3
    %59 = vst.msk [vmem:[%s58] ss:$8 sm:$0xf] %vm57, %v56
    %s60 = scalar_lea.vmem [#allocation0], 3
    %61 = vst.msk [vmem:[%s60] ss:$8 sm:$0xf0] %vm57, %v56
    %s62 = scalar_lea.vmem %s0, 4
    %v63 = vld.sshfl [vmem:[%s62] sm:$0xff pattern:$0xb3a29180]
    %64 = vrot.lane.b32.xlu0 %v63, 80
    %v65 = vpop.permute.xlu0 %64
    %vm66 = vcmask 130048
    %s67 = scalar_lea.vmem [#allocation0], 67
    %68 = vst.msk [vmem:[%s67] ss:$8 sm:$0xf] %vm66, %v65
    %s69 = scalar_lea.vmem [#allocation0], 67
    %70 = vst.msk [vmem:[%s69] ss:$8 sm:$0xf0] %vm66, %v65
    %v71 = vld.sshfl [vmem:[%s0] sm:$0xff pattern:$0xb3a29180]
    %72 = vrot.lane.b32.xlu0 %v71, 64
    %v73 = vpop.permute.xlu0 %72
    %vm74 = vcmask 130048
    %s75 = scalar_lea.vmem [#allocation0], 4
    %76 = vst.msk [vmem:[%s75] ss:$8 sm:$0xf] %vm74, %v73
    %s77 = scalar_lea.vmem [#allocation0], 4
    %78 = vst.msk [vmem:[%s77] ss:$8 sm:$0xf0] %vm74, %v73
    %s79 = scalar_lea.vmem %s0, 4
    %v80 = vld.sshfl [vmem:[%s79] sm:$0xff pattern:$0xb3a29180]
    %81 = vrot.lane.b32.xlu0 %v80, 64
    %v82 = vpop.permute.xlu0 %81
    %vm83 = vcmask 130048
    %s84 = scalar_lea.vmem [#allocation0], 68
    %85 = vst.msk [vmem:[%s84] ss:$8 sm:$0xf] %vm83, %v82
    %s86 = scalar_lea.vmem [#allocation0], 68
    %87 = vst.msk [vmem:[%s86] ss:$8 sm:$0xf0] %vm83, %v82
    %v88 = vld.sshfl [vmem:[%s0] sm:$0xff pattern:$0xb3a29180]
    %89 = vrot.lane.b32.xlu0 %v88, 48
    %v90 = vpop.permute.xlu0 %89
    %vm91 = vcmask 130048
    %s92 = scalar_lea.vmem [#allocation0], 5
    %93 = vst.msk [vmem:[%s92] ss:$8 sm:$0xf] %vm91, %v90
    %s94 = scalar_lea.vmem [#allocation0], 5
    %95 = vst.msk [vmem:[%s94] ss:$8 sm:$0xf0] %vm91, %v90
    %s96 = scalar_lea.vmem %s0, 4
    %v97 = vld.sshfl [vmem:[%s96] sm:$0xff pattern:$0xb3a29180]
    %98 = vrot.lane.b32.xlu0 %v97, 48
    %v99 = vpop.permute.xlu0 %98
    %vm100 = vcmask 130048
    %s101 = scalar_lea.vmem [#allocation0], 69
    %102 = vst.msk [vmem:[%s101] ss:$8 sm:$0xf] %vm100, %v99
    %s103 = scalar_lea.vmem [#allocation0], 69
    %104 = vst.msk [vmem:[%s103] ss:$8 sm:$0xf0] %vm100, %v99
    %v105 = vld.sshfl [vmem:[%s0] sm:$0xff pattern:$0xb3a29180]
    %106 = vrot.lane.b32.xlu0 %v105, 32
    %v107 = vpop.permute.xlu0 %106
    %vm108 = vcmask 130048
    %s109 = scalar_lea.vmem [#allocation0], 6
    %110 = vst.msk [vmem:[%s109] ss:$8 sm:$0xf] %vm108, %v107
    %s111 = scalar_lea.vmem [#allocation0], 6
    %112 = vst.msk [vmem:[%s111] ss:$8 sm:$0xf0] %vm108, %v107
    %s113 = scalar_lea.vmem %s0, 4
    %v114 = vld.sshfl [vmem:[%s113] sm:$0xff pattern:$0xb3a29180]
    %115 = vrot.lane.b32.xlu0 %v114, 32
    %v116 = vpop.permute.xlu0 %115
    %vm117 = vcmask 130048
    %s118 = scalar_lea.vmem [#allocation0], 70
    %119 = vst.msk [vmem:[%s118] ss:$8 sm:$0xf] %vm117, %v116
    %s120 = scalar_lea.vmem [#allocation0], 70
    %121 = vst.msk [vmem:[%s120] ss:$8 sm:$0xf0] %vm117, %v116
    %v122 = vld.sshfl [vmem:[%s0] sm:$0xff pattern:$0xb3a29180]
    %123 = vrot.lane.b32.xlu0 %v122, 16
    %v124 = vpop.permute.xlu0 %123
    %vm125 = vcmask 130048
    %s126 = scalar_lea.vmem [#allocation0], 7
    %127 = vst.msk [vmem:[%s126] ss:$8 sm:$0xf] %vm125, %v124
    %s128 = scalar_lea.vmem [#allocation0], 7
    %129 = vst.msk [vmem:[%s128] ss:$8 sm:$0xf0] %vm125, %v124
    %s130 = scalar_lea.vmem %s0, 4
    %v131 = vld.sshfl [vmem:[%s130] sm:$0xff pattern:$0xb3a29180]
    %132 = vrot.lane.b32.xlu0 %v131, 16
    %v133 = vpop.permute.xlu0 %132
    %vm134 = vcmask 130048
    %s135 = scalar_lea.vmem [#allocation0], 71
    %136 = vst.msk [vmem:[%s135] ss:$8 sm:$0xf] %vm134, %v133
    %s137 = scalar_lea.vmem [#allocation0], 71
    %138 = vst.msk [vmem:[%s137] ss:$8 sm:$0xf0] %vm134, %v133
    %s140 = ssub.s32 2048, 2048
    %141 = vsyncadd [#allocation1], %s140
    %s143 = sshll.u32 [#allocation0], 4
    %s144 = int_to_ptr.vmem [resolvable:$true] %s143
    %146 = dma.vmem_to_hbm [thread:$0]  %s144, 2048, %s1, [#allocation1]
    %147 = dma.done [#allocation1], 2048
    %148 = vsyncpa [#allocation1], 1

// kernel: decouple_view_projection.1
$region0: #{decouple_view_projection.1}
  #allocation0 [shape = 'u32[]', space=smem, size = 0x4, offset = 0x4, fixed_abs, tag = 'smem constant byte address 0x4 - core index']
  #allocation1 [shape = 'u32[144,128]{1,0:T(1,128)}', space=vmem, size = 0x12000, scoped, tag = 'internal scratch']
  %s0 = inlined_call_operand.vmem [shape: f32[8,256], index: 0, kind: input, shape index: {}]
  %s1 = inlined_call_operand.hbm [shape: bf16[256,512], index: 1, kind: input, shape index: {}]
  %s2 = inlined_call_operand.vmem [shape: f32[1,512], index: 2, kind: input, shape index: {}]
  %s3 = inlined_call_operand.hbm [shape: bf16[2,256,256], index: 3, kind: input, shape index: {}]
  %s4 = inlined_call_operand.vmem [shape: f32[2,1,256], index: 4, kind: input, shape index: {}]
  %s5 = inlined_call_operand.vmem [shape: f32[2,8,256], index: 5, kind: output, shape index: {}]
  %s6 = sld [smem:[#allocation0]]
  $region38: #{decouple_view_projection.1} parent=0
    _
  %s8 = ssub.s32 1, %s6
  %s9 = scalar_select 0, %s8, %s6
  $region1: #{decouple_view_projection.1} parent=0
    #allocation2 [shape = 'u8[262144]{0}', space=vmem, size = 0x40000, scoped, tag = 'input window, operand 1, single buffered']
    #allocation3 [shape = 's32[1]{0}', space=sflag, size = 0x4, scoped, tag = 'scoped memory for decouple_view_projection.1']
    #allocation4 [shape = 'u8[262144]{0}', space=vmem, size = 0x40000, scoped, tag = 'input window, operand 3, single buffered']
    #allocation5 [shape = 's32[1]{0}', space=sflag, size = 0x4, scoped, tag = 'scoped memory for decouple_view_projection.1']
    %10 = vsyncpa [#allocation3], 0
    %11 = vsyncpa [#allocation5], 0
    // Predicated region
    $region2: #{decouple_view_projection.1} parent=1 // pred_check
      _
    $region3: #{decouple_view_projection.1} parent=1 // pred_check_branch
      %13 = sbr.rel (0) target = $region5
    $region4: #{decouple_view_projection.1} parent=1 // pred_region
      _
    $region5: #{decouple_view_projection.1} parent=1 // pred_fallthru
      _
    // Predicated region
    $region6: #{decouple_view_projection.1} parent=1 // pred_check
      _
    $region7: #{decouple_view_projection.1} parent=1 // pred_check_branch
      %15 = sbr.rel (0) target = $region9
    $region8: #{decouple_view_projection.1} parent=1 // pred_region
      %s17 = ssub.s32 8192, 8192
      %18 = vsyncadd [#allocation3], %s17
      %s19 = sshll.u32 [#allocation2], 4
      %s20 = int_to_ptr.vmem [resolvable:$true] %s19
      %25 = dma.hbm_to_vmem [thread:$0]  %s1, 8192, %s20, [#allocation3], 256, 256, 16
    $region9: #{decouple_view_projection.1} parent=1 // pred_fallthru
      _
    // Predicated region
    $region10: #{decouple_view_projection.1} parent=1 // pred_check
      _
    $region11: #{decouple_view_projection.1} parent=1 // pred_check_branch
      %27 = sbr.rel (0) target = $region13
    $region12: #{decouple_view_projection.1} parent=1 // pred_region
      _
    $region13: #{decouple_view_projection.1} parent=1 // pred_fallthru
      _
    // Predicated region
    $region14: #{decouple_view_projection.1} parent=1 // pred_check
      _
    $region15: #{decouple_view_projection.1} parent=1 // pred_check_branch
      %29 = sbr.rel (0) target = $region17
    $region16: #{decouple_view_projection.1} parent=1 // pred_region
      %s31 = ssub.s32 8192, 8192
      %32 = vsyncadd [#allocation5], %s31
      %s33 = sshll.u32 [#allocation4], 4
      %s34 = int_to_ptr.vmem [resolvable:$true] %s33
      %39 = dma.hbm_to_vmem [thread:$0]  %s3, 8192, %s34, [#allocation5], 128, 128, 8
    $region17: #{decouple_view_projection.1} parent=1 // pred_fallthru
      _
    // Predicated region
    $region18: #{decouple_view_projection.1} parent=1 // pred_check
      _
    $region19: #{decouple_view_projection.1} parent=1 // pred_check_branch
      %41 = sbr.rel (0) target = $region21
    $region20: #{decouple_view_projection.1} parent=1 // pred_region
      _
    $region21: #{decouple_view_projection.1} parent=1 // pred_fallthru
      _
    // Predicated region
    $region22: #{decouple_view_projection.1} parent=1 // pred_check
      _
    $region23: #{decouple_view_projection.1} parent=1 // pred_check_branch
      %43 = sbr.rel (0) target = $region25
    $region24: #{decouple_view_projection.1} parent=1 // pred_region
      %44 = dma.done [#allocation3], 8192
    $region25: #{decouple_view_projection.1} parent=1 // pred_fallthru
      _
    // Predicated region
    $region26: #{decouple_view_projection.1} parent=1 // pred_check
      _
    $region27: #{decouple_view_projection.1} parent=1 // pred_check_branch
      %46 = sbr.rel (0) target = $region29
    $region28: #{decouple_view_projection.1} parent=1 // pred_region
      %47 = dma.done [#allocation5], 8192
    $region29: #{decouple_view_projection.1} parent=1 // pred_fallthru
      _
    %v48 = vld [vmem:[%s0] sm:$0xff]
    %v49 = vld [vmem:[%s0 + $0x8] sm:$0xff]
    %v50 = vpack.c.bf16 %v48, %v48
    %v51 = vpack.c.bf16 %v49, %v49
    %v52 = vld [vmem:[#allocation2] sm:$0xff]
    %v53 = vld [vmem:[#allocation2 + $0x8] sm:$0xff]
    %v54 = vld [vmem:[#allocation2 + $0x10] sm:$0xff]
    %v55 = vld [vmem:[#allocation2 + $0x18] sm:$0xff]
    %v56 = vld [vmem:[#allocation2 + $0x20] sm:$0xff]
    %v57 = vld [vmem:[#allocation2 + $0x28] sm:$0xff]
    %v58 = vld [vmem:[#allocation2 + $0x30] sm:$0xff]
    %v59 = vld [vmem:[#allocation2 + $0x38] sm:$0xff]
    %v60 = vld [vmem:[#allocation2 + $0x40] sm:$0xff]
    %v61 = vld [vmem:[#allocation2 + $0x48] sm:$0xff]
    %v62 = vld [vmem:[#allocation2 + $0x50] sm:$0xff]
    %v63 = vld [vmem:[#allocation2 + $0x58] sm:$0xff]
    %v64 = vld [vmem:[#allocation2 + $0x60] sm:$0xff]
    %v65 = vld [vmem:[#allocation2 + $0x68] sm:$0xff]
    %v66 = vld [vmem:[#allocation2 + $0x70] sm:$0xff]
    %v67 = vld [vmem:[#allocation2 + $0x78] sm:$0xff]
    %v68 = vld [vmem:[#allocation2 + $0x80] sm:$0xff]
    %v69 = vld [vmem:[#allocation2 + $0x88] sm:$0xff]
    %v70 = vld [vmem:[#allocation2 + $0x90] sm:$0xff]
    %v71 = vld [vmem:[#allocation2 + $0x98] sm:$0xff]
    %v72 = vld [vmem:[#allocation2 + $0xa0] sm:$0xff]
    %v73 = vld [vmem:[#allocation2 + $0xa8] sm:$0xff]
    %v74 = vld [vmem:[#allocation2 + $0xb0] sm:$0xff]
    %v75 = vld [vmem:[#allocation2 + $0xb8] sm:$0xff]
    %v76 = vld [vmem:[#allocation2 + $0xc0] sm:$0xff]
    %v77 = vld [vmem:[#allocation2 + $0xc8] sm:$0xff]
    %v78 = vld [vmem:[#allocation2 + $0xd0] sm:$0xff]
    %v79 = vld [vmem:[#allocation2 + $0xd8] sm:$0xff]
    %v80 = vld [vmem:[#allocation2 + $0xe0] sm:$0xff]
    %v81 = vld [vmem:[#allocation2 + $0xe8] sm:$0xff]
    %v82 = vld [vmem:[#allocation2 + $0xf0] sm:$0xff]
    %v83 = vld [vmem:[#allocation2 + $0xf8] sm:$0xff]
    %v84 = vld [vmem:[#allocation2 + $0x100] sm:$0xff]
    %v85 = vld [vmem:[#allocation2 + $0x108] sm:$0xff]
    %v86 = vld [vmem:[#allocation2 + $0x110] sm:$0xff]
    %v87 = vld [vmem:[#allocation2 + $0x118] sm:$0xff]
    %v88 = vld [vmem:[#allocation2 + $0x120] sm:$0xff]
    %v89 = vld [vmem:[#allocation2 + $0x128] sm:$0xff]
    %v90 = vld [vmem:[#allocation2 + $0x130] sm:$0xff]
    %v91 = vld [vmem:[#allocation2 + $0x138] sm:$0xff]
    %v92 = vld [vmem:[#allocation2 + $0x140] sm:$0xff]
    %v93 = vld [vmem:[#allocation2 + $0x148] sm:$0xff]
    %v94 = vld [vmem:[#allocation2 + $0x150] sm:$0xff]
    %v95 = vld [vmem:[#allocation2 + $0x158] sm:$0xff]
    %v96 = vld [vmem:[#allocation2 + $0x160] sm:$0xff]
    %v97 = vld [vmem:[#allocation2 + $0x168] sm:$0xff]
    %v98 = vld [vmem:[#allocation2 + $0x170] sm:$0xff]
    %v99 = vld [vmem:[#allocation2 + $0x178] sm:$0xff]
    %v100 = vld [vmem:[#allocation2 + $0x180] sm:$0xff]
    %v101 = vld [vmem:[#allocation2 + $0x188] sm:$0xff]
    %v102 = vld [vmem:[#allocation2 + $0x190] sm:$0xff]
    %v103 = vld [vmem:[#allocation2 + $0x198] sm:$0xff]
    %v104 = vld [vmem:[#allocation2 + $0x1a0] sm:$0xff]
    %v105 = vld [vmem:[#allocation2 + $0x1a8] sm:$0xff]
    %v106 = vld [vmem:[#allocation2 + $0x1b0] sm:$0xff]
    %v107 = vld [vmem:[#allocation2 + $0x1b8] sm:$0xff]
    %v108 = vld [vmem:[#allocation2 + $0x1c0] sm:$0xff]
    %v109 = vld [vmem:[#allocation2 + $0x1c8] sm:$0xff]
    %v110 = vld [vmem:[#allocation2 + $0x1d0] sm:$0xff]
    %v111 = vld [vmem:[#allocation2 + $0x1d8] sm:$0xff]
    %v112 = vld [vmem:[#allocation2 + $0x1e0] sm:$0xff]
    %v113 = vld [vmem:[#allocation2 + $0x1e8] sm:$0xff]
    %v114 = vld [vmem:[#allocation2 + $0x1f0] sm:$0xff]
    %v115 = vld [vmem:[#allocation2 + $0x1f8] sm:$0xff]
    %v116 = vld [vmem:[%s2] sm:$0xf]
    %v118 = vlaneseq
    %v119 = vshrl.u32 %v118, 7
    %v120 = vsub.s32 0, %v119
    %v121 = vrot.slane %v116, %v120
    %v122 = vlaneseq
    %v123 = vshrl.u32 %v122, 7
    %v124 = vsub.s32 1, %v123
    %v125 = vrot.slane %v116, %v124
    %v126 = vlaneseq
    %v127 = vshrl.u32 %v126, 7
    %v128 = vsub.s32 2, %v127
    %v129 = vrot.slane %v116, %v128
    %v130 = vlaneseq
    %v131 = vshrl.u32 %v130, 7
    %v132 = vsub.s32 3, %v131
    %v133 = vrot.slane %v116, %v132
    %v202 = vunpack.c.l.b16 %v52
    %v203 = vunpack.c.h.b16 %v52
    %v204 = vunpack.c.l.b16 %v53
    %v205 = vunpack.c.h.b16 %v53
    %v206 = vunpack.c.l.b16 %v54
    %v207 = vunpack.c.h.b16 %v54
    %v208 = vunpack.c.l.b16 %v55
    %v209 = vunpack.c.h.b16 %v55
    %v210 = vunpack.c.l.b16 %v56
    %v211 = vunpack.c.h.b16 %v56
    %v212 = vunpack.c.l.b16 %v57
    %v213 = vunpack.c.h.b16 %v57
    %v214 = vunpack.c.l.b16 %v58
    %v215 = vunpack.c.h.b16 %v58
    %v216 = vunpack.c.l.b16 %v59
    %v217 = vunpack.c.h.b16 %v59
    %v218 = vunpack.c.l.b16 %v60
    %v219 = vunpack.c.h.b16 %v60
    %v220 = vunpack.c.l.b16 %v61
    %v221 = vunpack.c.h.b16 %v61
    %v222 = vunpack.c.l.b16 %v62
    %v223 = vunpack.c.h.b16 %v62
    %v224 = vunpack.c.l.b16 %v63
    %v225 = vunpack.c.h.b16 %v63
    %v226 = vunpack.c.l.b16 %v64
    %v227 = vunpack.c.h.b16 %v64
    %v228 = vunpack.c.l.b16 %v65
    %v229 = vunpack.c.h.b16 %v65
    %v230 = vunpack.c.l.b16 %v66
    %v231 = vunpack.c.h.b16 %v66
    %v232 = vunpack.c.l.b16 %v67
    %v233 = vunpack.c.h.b16 %v67
    %v234 = vunpack.c.l.b16 %v68
    %v235 = vunpack.c.h.b16 %v68
    %v236 = vunpack.c.l.b16 %v69
    %v237 = vunpack.c.h.b16 %v69
    %v238 = vunpack.c.l.b16 %v70
    %v239 = vunpack.c.h.b16 %v70
    %v240 = vunpack.c.l.b16 %v71
    %v241 = vunpack.c.h.b16 %v71
    %v242 = vunpack.c.l.b16 %v72
    %v243 = vunpack.c.h.b16 %v72
    %v244 = vunpack.c.l.b16 %v73
    %v245 = vunpack.c.h.b16 %v73
    %v246 = vunpack.c.l.b16 %v74
    %v247 = vunpack.c.h.b16 %v74
    %v248 = vunpack.c.l.b16 %v75
    %v249 = vunpack.c.h.b16 %v75
    %v250 = vunpack.c.l.b16 %v76
    %v251 = vunpack.c.h.b16 %v76
    %v252 = vunpack.c.l.b16 %v77
    %v253 = vunpack.c.h.b16 %v77
    %v254 = vunpack.c.l.b16 %v78
    %v255 = vunpack.c.h.b16 %v78
    %v256 = vunpack.c.l.b16 %v79
    %v257 = vunpack.c.h.b16 %v79
    %v258 = vunpack.c.l.b16 %v80
    %v259 = vunpack.c.h.b16 %v80
    %v260 = vunpack.c.l.b16 %v81
    %v261 = vunpack.c.h.b16 %v81
    %v262 = vunpack.c.l.b16 %v82
    %v263 = vunpack.c.h.b16 %v82
    %v264 = vunpack.c.l.b16 %v83
    %v265 = vunpack.c.h.b16 %v83
    %v266 = vunpack.c.l.b16 %v84
    %v267 = vunpack.c.h.b16 %v84
    %v268 = vunpack.c.l.b16 %v85
    %v269 = vunpack.c.h.b16 %v85
    %v270 = vunpack.c.l.b16 %v86
    %v271 = vunpack.c.h.b16 %v86
    %v272 = vunpack.c.l.b16 %v87
    %v273 = vunpack.c.h.b16 %v87
    %v274 = vunpack.c.l.b16 %v88
    %v275 = vunpack.c.h.b16 %v88
    %v276 = vunpack.c.l.b16 %v89
    %v277 = vunpack.c.h.b16 %v89
    %v278 = vunpack.c.l.b16 %v90
    %v279 = vunpack.c.h.b16 %v90
    %v280 = vunpack.c.l.b16 %v91
    %v281 = vunpack.c.h.b16 %v91
    %v282 = vunpack.c.l.b16 %v92
    %v283 = vunpack.c.h.b16 %v92
    %v284 = vunpack.c.l.b16 %v93
    %v285 = vunpack.c.h.b16 %v93
    %v286 = vunpack.c.l.b16 %v94
    %v287 = vunpack.c.h.b16 %v94
    %v288 = vunpack.c.l.b16 %v95
    %v289 = vunpack.c.h.b16 %v95
    %v290 = vunpack.c.l.b16 %v96
    %v291 = vunpack.c.h.b16 %v96
    %v292 = vunpack.c.l.b16 %v97
    %v293 = vunpack.c.h.b16 %v97
    %v294 = vunpack.c.l.b16 %v98
    %v295 = vunpack.c.h.b16 %v98
    %v296 = vunpack.c.l.b16 %v99
    %v297 = vunpack.c.h.b16 %v99
    %v298 = vunpack.c.l.b16 %v100
    %v299 = vunpack.c.h.b16 %v100
    %v300 = vunpack.c.l.b16 %v101
    %v301 = vunpack.c.h.b16 %v101
    %v302 = vunpack.c.l.b16 %v102
    %v303 = vunpack.c.h.b16 %v102
    %v304 = vunpack.c.l.b16 %v103
    %v305 = vunpack.c.h.b16 %v103
    %v306 = vunpack.c.l.b16 %v104
    %v307 = vunpack.c.h.b16 %v104
    %v308 = vunpack.c.l.b16 %v105
    %v309 = vunpack.c.h.b16 %v105
    %v310 = vunpack.c.l.b16 %v106
    %v311 = vunpack.c.h.b16 %v106
    %v312 = vunpack.c.l.b16 %v107
    %v313 = vunpack.c.h.b16 %v107
    %v314 = vunpack.c.l.b16 %v108
    %v315 = vunpack.c.h.b16 %v108
    %v316 = vunpack.c.l.b16 %v109
    %v317 = vunpack.c.h.b16 %v109
    %v318 = vunpack.c.l.b16 %v110
    %v319 = vunpack.c.h.b16 %v110
    %v320 = vunpack.c.l.b16 %v111
    %v321 = vunpack.c.h.b16 %v111
    %v322 = vunpack.c.l.b16 %v112
    %v323 = vunpack.c.h.b16 %v112
    %v324 = vunpack.c.l.b16 %v113
    %v325 = vunpack.c.h.b16 %v113
    %v326 = vunpack.c.l.b16 %v114
    %v327 = vunpack.c.h.b16 %v114
    %v328 = vunpack.c.l.b16 %v115
    %v329 = vunpack.c.h.b16 %v115
    %v330 = vpack.c.b16 %v206, %v202
    %v331 = vpack.c.b16 %v207, %v203
    %v332 = vpack.c.b16 %v208, %v204
    %v333 = vpack.c.b16 %v209, %v205
    %v334 = vpack.c.b16 %v214, %v210
    %v335 = vpack.c.b16 %v215, %v211
    %v336 = vpack.c.b16 %v216, %v212
    %v337 = vpack.c.b16 %v217, %v213
    %v338 = vpack.c.b16 %v222, %v218
    %v339 = vpack.c.b16 %v223, %v219
    %v340 = vpack.c.b16 %v224, %v220
    %v341 = vpack.c.b16 %v225, %v221
    %v342 = vpack.c.b16 %v230, %v226
    %v343 = vpack.c.b16 %v231, %v227
    %v344 = vpack.c.b16 %v232, %v228
    %v345 = vpack.c.b16 %v233, %v229
    %v346 = vpack.c.b16 %v238, %v234
    %v347 = vpack.c.b16 %v239, %v235
    %v348 = vpack.c.b16 %v240, %v236
    %v349 = vpack.c.b16 %v241, %v237
    %v350 = vpack.c.b16 %v246, %v242
    %v351 = vpack.c.b16 %v247, %v243
    %v352 = vpack.c.b16 %v248, %v244
    %v353 = vpack.c.b16 %v249, %v245
    %v354 = vpack.c.b16 %v254, %v250
    %v355 = vpack.c.b16 %v255, %v251
    %v356 = vpack.c.b16 %v256, %v252
    %v357 = vpack.c.b16 %v257, %v253
    %v358 = vpack.c.b16 %v262, %v258
    %v359 = vpack.c.b16 %v263, %v259
    %v360 = vpack.c.b16 %v264, %v260
    %v361 = vpack.c.b16 %v265, %v261
    %v362 = vpack.c.b16 %v270, %v266
    %v363 = vpack.c.b16 %v271, %v267
    %v364 = vpack.c.b16 %v272, %v268
    %v365 = vpack.c.b16 %v273, %v269
    %v366 = vpack.c.b16 %v278, %v274
    %v367 = vpack.c.b16 %v279, %v275
    %v368 = vpack.c.b16 %v280, %v276
    %v369 = vpack.c.b16 %v281, %v277
    %v370 = vpack.c.b16 %v286, %v282
    %v371 = vpack.c.b16 %v287, %v283
    %v372 = vpack.c.b16 %v288, %v284
    %v373 = vpack.c.b16 %v289, %v285
    %v374 = vpack.c.b16 %v294, %v290
    %v375 = vpack.c.b16 %v295, %v291
    %v376 = vpack.c.b16 %v296, %v292
    %v377 = vpack.c.b16 %v297, %v293
    %v378 = vpack.c.b16 %v302, %v298
    %v379 = vpack.c.b16 %v303, %v299
    %v380 = vpack.c.b16 %v304, %v300
    %v381 = vpack.c.b16 %v305, %v301
    %v382 = vpack.c.b16 %v310, %v306
    %v383 = vpack.c.b16 %v311, %v307
    %v384 = vpack.c.b16 %v312, %v308
    %v385 = vpack.c.b16 %v313, %v309
    %v386 = vpack.c.b16 %v318, %v314
    %v387 = vpack.c.b16 %v319, %v315
    %v388 = vpack.c.b16 %v320, %v316
    %v389 = vpack.c.b16 %v321, %v317
    %v390 = vpack.c.b16 %v326, %v322
    %v391 = vpack.c.b16 %v327, %v323
    %v392 = vpack.c.b16 %v328, %v324
    %v393 = vpack.c.b16 %v329, %v325
    %458 = vmatprep.subr.bf16.mxu0 %v331
    %459 = vmatpush1.bf16.msra.mxu0 %v330
    %460 = vmatprep.subr.bf16.mxu0 %v335
    %461 = vmatpush1.bf16.msra.mxu0 %v334
    %462 = vmatprep.subr.bf16.mxu0 %v339
    %463 = vmatpush1.bf16.msra.mxu0 %v338
    %464 = vmatprep.subr.bf16.mxu0 %v343
    %465 = vmatpush1.bf16.msra.mxu0 %v342
    %466 = vmatprep.subr.bf16.mxu0 %v347
    %467 = vmatpush1.bf16.msra.mxu0 %v346
    %468 = vmatprep.subr.bf16.mxu0 %v351
    %469 = vmatpush1.bf16.msra.mxu0 %v350
    %470 = vmatprep.subr.bf16.mxu0 %v355
    %471 = vmatpush1.bf16.msra.mxu0 %v354
    %472 = vmatprep.subr.bf16.mxu0 %v359
    %473 = vmatpush1.bf16.msra.mxu0 %v358
    %474 = vmatprep.subr.bf16.mxu0 %v363
    %475 = vmatpush1.bf16.msra.mxu0 %v362
    %476 = vmatprep.subr.bf16.mxu0 %v367
    %477 = vmatpush1.bf16.msra.mxu0 %v366
    %478 = vmatprep.subr.bf16.mxu0 %v371
    %479 = vmatpush1.bf16.msra.mxu0 %v370
    %480 = vmatprep.subr.bf16.mxu0 %v375
    %481 = vmatpush1.bf16.msra.mxu0 %v374
    %482 = vmatprep.subr.bf16.mxu0 %v379
    %483 = vmatpush1.bf16.msra.mxu0 %v378
    %484 = vmatprep.subr.bf16.mxu0 %v383
    %485 = vmatpush1.bf16.msra.mxu0 %v382
    %486 = vmatprep.subr.bf16.mxu0 %v387
    %487 = vmatpush1.bf16.msra.mxu0 %v386
    %488 = vmatprep.subr.bf16.mxu0 %v391
    %489 = vmatpush1.bf16.msra.mxu0 %v390
    %490 = vmatprep.mubr.bf16.mxu0 %v51
    %491 = vmatmul.mubr.bf16.gmra.mrb[0].mxu0 %v50
    %v492 = vpop.f32.mrb[0].mxu0
    %v493 = vadd.f32 %v121, %v492
    %v494 = vpop.f32.mrb[0].mxu0
    %v495 = vadd.f32 %v125, %v494
    %v496 = vpop.f32.mrb[0].mxu0
    %v497 = vpop.f32.mrb[0].mxu0
    %498 = vdwg.mxu0
    %499 = vmatprep.subr.bf16.mxu0 %v333
    %500 = vmatpush1.bf16.msra.mxu0 %v332
    %501 = vmatprep.subr.bf16.mxu0 %v337
    %502 = vmatpush1.bf16.msra.mxu0 %v336
    %503 = vmatprep.subr.bf16.mxu0 %v341
    %504 = vmatpush1.bf16.msra.mxu0 %v340
    %505 = vmatprep.subr.bf16.mxu0 %v345
    %506 = vmatpush1.bf16.msra.mxu0 %v344
    %507 = vmatprep.subr.bf16.mxu0 %v349
    %508 = vmatpush1.bf16.msra.mxu0 %v348
    %509 = vmatprep.subr.bf16.mxu0 %v353
    %510 = vmatpush1.bf16.msra.mxu0 %v352
    %511 = vmatprep.subr.bf16.mxu0 %v357
    %512 = vmatpush1.bf16.msra.mxu0 %v356
    %513 = vmatprep.subr.bf16.mxu0 %v361
    %514 = vmatpush1.bf16.msra.mxu0 %v360
    %515 = vmatprep.subr.bf16.mxu0 %v365
    %516 = vmatpush1.bf16.msra.mxu0 %v364
    %517 = vmatprep.subr.bf16.mxu0 %v369
    %518 = vmatpush1.bf16.msra.mxu0 %v368
    %519 = vmatprep.subr.bf16.mxu0 %v373
    %520 = vmatpush1.bf16.msra.mxu0 %v372
    %521 = vmatprep.subr.bf16.mxu0 %v377
    %522 = vmatpush1.bf16.msra.mxu0 %v376
    %523 = vmatprep.subr.bf16.mxu0 %v381
    %524 = vmatpush1.bf16.msra.mxu0 %v380
    %525 = vmatprep.subr.bf16.mxu0 %v385
    %526 = vmatpush1.bf16.msra.mxu0 %v384
    %527 = vmatprep.subr.bf16.mxu0 %v389
    %528 = vmatpush1.bf16.msra.mxu0 %v388
    %529 = vmatprep.subr.bf16.mxu0 %v393
    %530 = vmatpush1.bf16.msra.mxu0 %v392
    %531 = vmatprep.mubr.bf16.mxu0 %v51
    %532 = vmatmul.mubr.bf16.gmra.mrb[0].mxu0 %v50
    %v533 = vpop.f32.mrb[0].mxu0
    %v534 = vadd.f32 %v129, %v533
    %v535 = vpop.f32.mrb[0].mxu0
    %v536 = vadd.f32 %v133, %v535
    %v537 = vpop.f32.mrb[0].mxu0
    %v538 = vpop.f32.mrb[0].mxu0
    %539 = vdwg.mxu0
    %v540 = vmax.f32 %v493, 0.0
    %v541 = vmax.f32 %v495, 0.0
    %v542 = vmax.f32 %v534, 0.0
    %v543 = vmax.f32 %v536, 0.0
    %v544 = vpack.c.bf16 %v540, %v540
    %v545 = vpack.c.bf16 %v541, %v541
    %v546 = vpack.c.bf16 %v542, %v542
    %v547 = vpack.c.bf16 %v543, %v543
    %v548 = vld [vmem:[#allocation4] sm:$0xff]
    %v549 = vld [vmem:[#allocation4 + $0x8] sm:$0xff]
    %v550 = vld [vmem:[#allocation4 + $0x10] sm:$0xff]
    %v551 = vld [vmem:[#allocation4 + $0x18] sm:$0xff]
    %v552 = vld [vmem:[#allocation4 + $0x20] sm:$0xff]
    %v553 = vld [vmem:[#allocation4 + $0x28] sm:$0xff]
    %v554 = vld [vmem:[#allocation4 + $0x30] sm:$0xff]
    %v555 = vld [vmem:[#allocation4 + $0x38] sm:$0xff]
    %v556 = vld [vmem:[#allocation4 + $0x40] sm:$0xff]
    %v557 = vld [vmem:[#allocation4 + $0x48] sm:$0xff]
    %v558 = vld [vmem:[#allocation4 + $0x50] sm:$0xff]
    %v559 = vld [vmem:[#allocation4 + $0x58] sm:$0xff]
    %v560 = vld [vmem:[#allocation4 + $0x60] sm:$0xff]
    %v561 = vld [vmem:[#allocation4 + $0x68] sm:$0xff]
    %v562 = vld [vmem:[#allocation4 + $0x70] sm:$0xff]
    %v563 = vld [vmem:[#allocation4 + $0x78] sm:$0xff]
    %v564 = vld [vmem:[#allocation4 + $0x80] sm:$0xff]
    %v565 = vld [vmem:[#allocation4 + $0x88] sm:$0xff]
    %v566 = vld [vmem:[#allocation4 + $0x90] sm:$0xff]
    %v567 = vld [vmem:[#allocation4 + $0x98] sm:$0xff]
    %v568 = vld [vmem:[#allocation4 + $0xa0] sm:$0xff]
    %v569 = vld [vmem:[#allocation4 + $0xa8] sm:$0xff]
    %v570 = vld [vmem:[#allocation4 + $0xb0] sm:$0xff]
    %v571 = vld [vmem:[#allocation4 + $0xb8] sm:$0xff]
    %v572 = vld [vmem:[#allocation4 + $0xc0] sm:$0xff]
    %v573 = vld [vmem:[#allocation4 + $0xc8] sm:$0xff]
    %v574 = vld [vmem:[#allocation4 + $0xd0] sm:$0xff]
    %v575 = vld [vmem:[#allocation4 + $0xd8] sm:$0xff]
    %v576 = vld [vmem:[#allocation4 + $0xe0] sm:$0xff]
    %v577 = vld [vmem:[#allocation4 + $0xe8] sm:$0xff]
    %v578 = vld [vmem:[#allocation4 + $0xf0] sm:$0xff]
    %v579 = vld [vmem:[#allocation4 + $0xf8] sm:$0xff]
    %s580 = scalar_lea.vmem [#allocation4], 256
    %v581 = vld [vmem:[%s580] sm:$0xff]
    %v582 = vld [vmem:[%s580 + $0x8] sm:$0xff]
    %v583 = vld [vmem:[%s580 + $0x10] sm:$0xff]
    %v584 = vld [vmem:[%s580 + $0x18] sm:$0xff]
    %v585 = vld [vmem:[%s580 + $0x20] sm:$0xff]
    %v586 = vld [vmem:[%s580 + $0x28] sm:$0xff]
    %v587 = vld [vmem:[%s580 + $0x30] sm:$0xff]
    %v588 = vld [vmem:[%s580 + $0x38] sm:$0xff]
    %v589 = vld [vmem:[%s580 + $0x40] sm:$0xff]
    %v590 = vld [vmem:[%s580 + $0x48] sm:$0xff]
    %v591 = vld [vmem:[%s580 + $0x50] sm:$0xff]
    %v592 = vld [vmem:[%s580 + $0x58] sm:$0xff]
    %v593 = vld [vmem:[%s580 + $0x60] sm:$0xff]
    %v594 = vld [vmem:[%s580 + $0x68] sm:$0xff]
    %v595 = vld [vmem:[%s580 + $0x70] sm:$0xff]
    %v596 = vld [vmem:[%s580 + $0x78] sm:$0xff]
    %v597 = vld [vmem:[%s580 + $0x80] sm:$0xff]
    %v598 = vld [vmem:[%s580 + $0x88] sm:$0xff]
    %v599 = vld [vmem:[%s580 + $0x90] sm:$0xff]
    %v600 = vld [vmem:[%s580 + $0x98] sm:$0xff]
    %v601 = vld [vmem:[%s580 + $0xa0] sm:$0xff]
    %v602 = vld [vmem:[%s580 + $0xa8] sm:$0xff]
    %v603 = vld [vmem:[%s580 + $0xb0] sm:$0xff]
    %v604 = vld [vmem:[%s580 + $0xb8] sm:$0xff]
    %v605 = vld [vmem:[%s580 + $0xc0] sm:$0xff]
    %v606 = vld [vmem:[%s580 + $0xc8] sm:$0xff]
    %v607 = vld [vmem:[%s580 + $0xd0] sm:$0xff]
    %v608 = vld [vmem:[%s580 + $0xd8] sm:$0xff]
    %v609 = vld [vmem:[%s580 + $0xe0] sm:$0xff]
    %v610 = vld [vmem:[%s580 + $0xe8] sm:$0xff]
    %v611 = vld [vmem:[%s580 + $0xf0] sm:$0xff]
    %v612 = vld [vmem:[%s580 + $0xf8] sm:$0xff]
    %v613 = vld [vmem:[%s4] sm:$0x3]
    %v615 = vlaneseq
    %v616 = vshrl.u32 %v615, 7
    %v617 = vsub.s32 0, %v616
    %v618 = vrot.slane %v613, %v617
    %v619 = vlaneseq
    %v620 = vshrl.u32 %v619, 7
    %v621 = vsub.s32 1, %v620
    %v622 = vrot.slane %v613, %v621
    %v657 = vunpack.c.l.b16 %v548
    %v658 = vunpack.c.h.b16 %v548
    %v659 = vunpack.c.l.b16 %v549
    %v660 = vunpack.c.h.b16 %v549
    %v661 = vunpack.c.l.b16 %v550
    %v662 = vunpack.c.h.b16 %v550
    %v663 = vunpack.c.l.b16 %v551
    %v664 = vunpack.c.h.b16 %v551
    %v665 = vunpack.c.l.b16 %v552
    %v666 = vunpack.c.h.b16 %v552
    %v667 = vunpack.c.l.b16 %v553
    %v668 = vunpack.c.h.b16 %v553
    %v669 = vunpack.c.l.b16 %v554
    %v670 = vunpack.c.h.b16 %v554
    %v671 = vunpack.c.l.b16 %v555
    %v672 = vunpack.c.h.b16 %v555
    %v673 = vunpack.c.l.b16 %v556
    %v674 = vunpack.c.h.b16 %v556
    %v675 = vunpack.c.l.b16 %v557
    %v676 = vunpack.c.h.b16 %v557
    %v677 = vunpack.c.l.b16 %v558
    %v678 = vunpack.c.h.b16 %v558
    %v679 = vunpack.c.l.b16 %v559
    %v680 = vunpack.c.h.b16 %v559
    %v681 = vunpack.c.l.b16 %v560
    %v682 = vunpack.c.h.b16 %v560
    %v683 = vunpack.c.l.b16 %v561
    %v684 = vunpack.c.h.b16 %v561
    %v685 = vunpack.c.l.b16 %v562
    %v686 = vunpack.c.h.b16 %v562
    %v687 = vunpack.c.l.b16 %v563
    %v688 = vunpack.c.h.b16 %v563
    %v689 = vunpack.c.l.b16 %v564
    %v690 = vunpack.c.h.b16 %v564
    %v691 = vunpack.c.l.b16 %v565
    %v692 = vunpack.c.h.b16 %v565
    %v693 = vunpack.c.l.b16 %v566
    %v694 = vunpack.c.h.b16 %v566
    %v695 = vunpack.c.l.b16 %v567
    %v696 = vunpack.c.h.b16 %v567
    %v697 = vunpack.c.l.b16 %v568
    %v698 = vunpack.c.h.b16 %v568
    %v699 = vunpack.c.l.b16 %v569
    %v700 = vunpack.c.h.b16 %v569
    %v701 = vunpack.c.l.b16 %v570
    %v702 = vunpack.c.h.b16 %v570
    %v703 = vunpack.c.l.b16 %v571
    %v704 = vunpack.c.h.b16 %v571
    %v705 = vunpack.c.l.b16 %v572
    %v706 = vunpack.c.h.b16 %v572
    %v707 = vunpack.c.l.b16 %v573
    %v708 = vunpack.c.h.b16 %v573
    %v709 = vunpack.c.l.b16 %v574
    %v710 = vunpack.c.h.b16 %v574
    %v711 = vunpack.c.l.b16 %v575
    %v712 = vunpack.c.h.b16 %v575
    %v713 = vunpack.c.l.b16 %v576
    %v714 = vunpack.c.h.b16 %v576
    %v715 = vunpack.c.l.b16 %v577
    %v716 = vunpack.c.h.b16 %v577
    %v717 = vunpack.c.l.b16 %v578
    %v718 = vunpack.c.h.b16 %v578
    %v719 = vunpack.c.l.b16 %v579
    %v720 = vunpack.c.h.b16 %v579
    %v721 = vpack.c.b16 %v659, %v657
    %v722 = vpack.c.b16 %v660, %v658
    %v723 = vpack.c.b16 %v663, %v661
    %v724 = vpack.c.b16 %v664, %v662
    %v725 = vpack.c.b16 %v667, %v665
    %v726 = vpack.c.b16 %v668, %v666
    %v727 = vpack.c.b16 %v671, %v669
    %v728 = vpack.c.b16 %v672, %v670
    %v729 = vpack.c.b16 %v675, %v673
    %v730 = vpack.c.b16 %v676, %v674
    %v731 = vpack.c.b16 %v679, %v677
    %v732 = vpack.c.b16 %v680, %v678
    %v733 = vpack.c.b16 %v683, %v681
    %v734 = vpack.c.b16 %v684, %v682
    %v735 = vpack.c.b16 %v687, %v685
    %v736 = vpack.c.b16 %v688, %v686
    %v737 = vpack.c.b16 %v691, %v689
    %v738 = vpack.c.b16 %v692, %v690
    %v739 = vpack.c.b16 %v695, %v693
    %v740 = vpack.c.b16 %v696, %v694
    %v741 = vpack.c.b16 %v699, %v697
    %v742 = vpack.c.b16 %v700, %v698
    %v743 = vpack.c.b16 %v703, %v701
    %v744 = vpack.c.b16 %v704, %v702
    %v745 = vpack.c.b16 %v707, %v705
    %v746 = vpack.c.b16 %v708, %v706
    %v747 = vpack.c.b16 %v711, %v709
    %v748 = vpack.c.b16 %v712, %v710
    %v749 = vpack.c.b16 %v715, %v713
    %v750 = vpack.c.b16 %v716, %v714
    %v751 = vpack.c.b16 %v719, %v717
    %v752 = vpack.c.b16 %v720, %v718
    %785 = vmatprep.subr.bf16.mxu0 %v722
    %786 = vmatpush1.bf16.msra.mxu0 %v721
    %787 = vmatprep.subr.bf16.mxu0 %v724
    %788 = vmatpush1.bf16.msra.mxu0 %v723
    %789 = vmatprep.subr.bf16.mxu0 %v726
    %790 = vmatpush1.bf16.msra.mxu0 %v725
    %791 = vmatprep.subr.bf16.mxu0 %v728
    %792 = vmatpush1.bf16.msra.mxu0 %v727
    %793 = vmatprep.subr.bf16.mxu0 %v730
    %794 = vmatpush1.bf16.msra.mxu0 %v729
    %795 = vmatprep.subr.bf16.mxu0 %v732
    %796 = vmatpush1.bf16.msra.mxu0 %v731
    %797 = vmatprep.subr.bf16.mxu0 %v734
    %798 = vmatpush1.bf16.msra.mxu0 %v733
    %799 = vmatprep.subr.bf16.mxu0 %v736
    %800 = vmatpush1.bf16.msra.mxu0 %v735
    %801 = vmatprep.subr.bf16.mxu0 %v738
    %802 = vmatpush1.bf16.msra.mxu0 %v737
    %803 = vmatprep.subr.bf16.mxu0 %v740
    %804 = vmatpush1.bf16.msra.mxu0 %v739
    %805 = vmatprep.subr.bf16.mxu0 %v742
    %806 = vmatpush1.bf16.msra.mxu0 %v741
    %807 = vmatprep.subr.bf16.mxu0 %v744
    %808 = vmatpush1.bf16.msra.mxu0 %v743
    %809 = vmatprep.subr.bf16.mxu0 %v746
    %810 = vmatpush1.bf16.msra.mxu0 %v745
    %811 = vmatprep.subr.bf16.mxu0 %v748
    %812 = vmatpush1.bf16.msra.mxu0 %v747
    %813 = vmatprep.subr.bf16.mxu0 %v750
    %814 = vmatpush1.bf16.msra.mxu0 %v749
    %815 = vmatprep.subr.bf16.mxu0 %v752
    %816 = vmatpush1.bf16.msra.mxu0 %v751
    %817 = vmatprep.mubr.bf16.mxu0 %v545
    %818 = vmatmul.mubr.bf16.gmra.mrb[0].mxu0 %v544
    %v819 = vpop.f32.mrb[0].mxu0
    %v820 = vadd.f32 %v618, %v819
    %v821 = vpop.f32.mrb[0].mxu0
    %v822 = vadd.f32 %v622, %v821
    %v823 = vpop.f32.mrb[0].mxu0
    %v824 = vpop.f32.mrb[0].mxu0
    %825 = vdwg.mxu0
    %v826 = vmax.f32 %v820, 0.0
    %v827 = vmax.f32 %v822, 0.0
    %828 = vst [vmem:[%s5] sm:$0xff] %v826
    %829 = vst [vmem:[%s5 + $0x8] sm:$0xff] %v827
    %s830 = scalar_lea.vmem %s4, 2
    %v831 = vld [vmem:[%s830] sm:$0x3]
    %v833 = vlaneseq
    %v834 = vshrl.u32 %v833, 7
    %v835 = vsub.s32 0, %v834
    %v836 = vrot.slane %v831, %v835
    %v837 = vlaneseq
    %v838 = vshrl.u32 %v837, 7
    %v839 = vsub.s32 1, %v838
    %v840 = vrot.slane %v831, %v839
    %v875 = vunpack.c.l.b16 %v581
    %v876 = vunpack.c.h.b16 %v581
    %v877 = vunpack.c.l.b16 %v582
    %v878 = vunpack.c.h.b16 %v582
    %v879 = vunpack.c.l.b16 %v583
    %v880 = vunpack.c.h.b16 %v583
    %v881 = vunpack.c.l.b16 %v584
    %v882 = vunpack.c.h.b16 %v584
    %v883 = vunpack.c.l.b16 %v585
    %v884 = vunpack.c.h.b16 %v585
    %v885 = vunpack.c.l.b16 %v586
    %v886 = vunpack.c.h.b16 %v586
    %v887 = vunpack.c.l.b16 %v587
    %v888 = vunpack.c.h.b16 %v587
    %v889 = vunpack.c.l.b16 %v588
    %v890 = vunpack.c.h.b16 %v588
    %v891 = vunpack.c.l.b16 %v589
    %v892 = vunpack.c.h.b16 %v589
    %v893 = vunpack.c.l.b16 %v590
    %v894 = vunpack.c.h.b16 %v590
    %v895 = vunpack.c.l.b16 %v591
    %v896 = vunpack.c.h.b16 %v591
    %v897 = vunpack.c.l.b16 %v592
    %v898 = vunpack.c.h.b16 %v592
    %v899 = vunpack.c.l.b16 %v593
    %v900 = vunpack.c.h.b16 %v593
    %v901 = vunpack.c.l.b16 %v594
    %v902 = vunpack.c.h.b16 %v594
    %v903 = vunpack.c.l.b16 %v595
    %v904 = vunpack.c.h.b16 %v595
    %v905 = vunpack.c.l.b16 %v596
    %v906 = vunpack.c.h.b16 %v596
    %v907 = vunpack.c.l.b16 %v597
    %v908 = vunpack.c.h.b16 %v597
    %v909 = vunpack.c.l.b16 %v598
    %v910 = vunpack.c.h.b16 %v598
    %v911 = vunpack.c.l.b16 %v599
    %v912 = vunpack.c.h.b16 %v599
    %v913 = vunpack.c.l.b16 %v600
    %v914 = vunpack.c.h.b16 %v600
    %v915 = vunpack.c.l.b16 %v601
    %v916 = vunpack.c.h.b16 %v601
    %v917 = vunpack.c.l.b16 %v602
    %v918 = vunpack.c.h.b16 %v602
    %v919 = vunpack.c.l.b16 %v603
    %v920 = vunpack.c.h.b16 %v603
    %v921 = vunpack.c.l.b16 %v604
    %v922 = vunpack.c.h.b16 %v604
    %v923 = vunpack.c.l.b16 %v605
    %v924 = vunpack.c.h.b16 %v605
    %v925 = vunpack.c.l.b16 %v606
    %v926 = vunpack.c.h.b16 %v606
    %v927 = vunpack.c.l.b16 %v607
    %v928 = vunpack.c.h.b16 %v607
    %v929 = vunpack.c.l.b16 %v608
    %v930 = vunpack.c.h.b16 %v608
    %v931 = vunpack.c.l.b16 %v609
    %v932 = vunpack.c.h.b16 %v609
    %v933 = vunpack.c.l.b16 %v610
    %v934 = vunpack.c.h.b16 %v610
    %v935 = vunpack.c.l.b16 %v611
    %v936 = vunpack.c.h.b16 %v611
    %v937 = vunpack.c.l.b16 %v612
    %v938 = vunpack.c.h.b16 %v612
    %v939 = vpack.c.b16 %v877, %v875
    %v940 = vpack.c.b16 %v878, %v876
    %v941 = vpack.c.b16 %v881, %v879
    %v942 = vpack.c.b16 %v882, %v880
    %v943 = vpack.c.b16 %v885, %v883
    %v944 = vpack.c.b16 %v886, %v884
    %v945 = vpack.c.b16 %v889, %v887
    %v946 = vpack.c.b16 %v890, %v888
    %v947 = vpack.c.b16 %v893, %v891
    %v948 = vpack.c.b16 %v894, %v892
    %v949 = vpack.c.b16 %v897, %v895
    %v950 = vpack.c.b16 %v898, %v896
    %v951 = vpack.c.b16 %v901, %v899
    %v952 = vpack.c.b16 %v902, %v900
    %v953 = vpack.c.b16 %v905, %v903
    %v954 = vpack.c.b16 %v906, %v904
    %v955 = vpack.c.b16 %v909, %v907
    %v956 = vpack.c.b16 %v910, %v908
    %v957 = vpack.c.b16 %v913, %v911
    %v958 = vpack.c.b16 %v914, %v912
    %v959 = vpack.c.b16 %v917, %v915
    %v960 = vpack.c.b16 %v918, %v916
    %v961 = vpack.c.b16 %v921, %v919
    %v962 = vpack.c.b16 %v922, %v920
    %v963 = vpack.c.b16 %v925, %v923
    %v964 = vpack.c.b16 %v926, %v924
    %v965 = vpack.c.b16 %v929, %v927
    %v966 = vpack.c.b16 %v930, %v928
    %v967 = vpack.c.b16 %v933, %v931
    %v968 = vpack.c.b16 %v934, %v932
    %v969 = vpack.c.b16 %v937, %v935
    %v970 = vpack.c.b16 %v938, %v936
    %1003 = vmatprep.subr.bf16.mxu0 %v940
    %1004 = vmatpush1.bf16.msra.mxu0 %v939
    %1005 = vmatprep.subr.bf16.mxu0 %v942
    %1006 = vmatpush1.bf16.msra.mxu0 %v941
    %1007 = vmatprep.subr.bf16.mxu0 %v944
    %1008 = vmatpush1.bf16.msra.mxu0 %v943
    %1009 = vmatprep.subr.bf16.mxu0 %v946
    %1010 = vmatpush1.bf16.msra.mxu0 %v945
    %1011 = vmatprep.subr.bf16.mxu0 %v948
    %1012 = vmatpush1.bf16.msra.mxu0 %v947
    %1013 = vmatprep.subr.bf16.mxu0 %v950
    %1014 = vmatpush1.bf16.msra.mxu0 %v949
    %1015 = vmatprep.subr.bf16.mxu0 %v952
    %1016 = vmatpush1.bf16.msra.mxu0 %v951
    %1017 = vmatprep.subr.bf16.mxu0 %v954
    %1018 = vmatpush1.bf16.msra.mxu0 %v953
    %1019 = vmatprep.subr.bf16.mxu0 %v956
    %1020 = vmatpush1.bf16.msra.mxu0 %v955
    %1021 = vmatprep.subr.bf16.mxu0 %v958
    %1022 = vmatpush1.bf16.msra.mxu0 %v957
    %1023 = vmatprep.subr.bf16.mxu0 %v960
    %1024 = vmatpush1.bf16.msra.mxu0 %v959
    %1025 = vmatprep.subr.bf16.mxu0 %v962
    %1026 = vmatpush1.bf16.msra.mxu0 %v961
    %1027 = vmatprep.subr.bf16.mxu0 %v964
    %1028 = vmatpush1.bf16.msra.mxu0 %v963
    %1029 = vmatprep.subr.bf16.mxu0 %v966
    %1030 = vmatpush1.bf16.msra.mxu0 %v965
    %1031 = vmatprep.subr.bf16.mxu0 %v968
    %1032 = vmatpush1.bf16.msra.mxu0 %v967
    %1033 = vmatprep.subr.bf16.mxu0 %v970
    %1034 = vmatpush1.bf16.msra.mxu0 %v969
    %1035 = vmatprep.mubr.bf16.mxu0 %v547
    %1036 = vmatmul.mubr.bf16.gmra.mrb[0].mxu0 %v546
    %v1037 = vpop.f32.mrb[0].mxu0
    %v1038 = vadd.f32 %v836, %v1037
    %v1039 = vpop.f32.mrb[0].mxu0
    %v1040 = vadd.f32 %v840, %v1039
    %v1041 = vpop.f32.mrb[0].mxu0
    %v1042 = vpop.f32.mrb[0].mxu0
    %1043 = vdwg.mxu0
    %v1044 = vmax.f32 %v1038, 0.0
    %v1045 = vmax.f32 %v1040, 0.0
    %s1046 = scalar_lea.vmem %s5, 16
    %1047 = vst [vmem:[%s1046] sm:$0xff] %v1044
    %1048 = vst [vmem:[%s1046 + $0x8] sm:$0xff] %v1045
    // Predicated region
    $region30: #{decouple_view_projection.1} parent=1 // pred_check
      _
    $region31: #{decouple_view_projection.1} parent=1 // pred_check_branch
      %1050 = sbr.rel (0) target = $region33
    $region32: #{decouple_view_projection.1} parent=1 // pred_region
      _
    $region33: #{decouple_view_projection.1} parent=1 // pred_fallthru
      _
    // Predicated region
    $region34: #{decouple_view_projection.1} parent=1 // pred_check
      _
    $region35: #{decouple_view_projection.1} parent=1 // pred_check_branch
      %1052 = sbr.rel (0) target = $region37
    $region36: #{decouple_view_projection.1} parent=1 // pred_region
      _
    $region37: #{decouple_view_projection.1} parent=1 // pred_fallthru
      _
    %1053 = vsyncpa [#allocation3], 1
    %1054 = vsyncpa [#allocation5], 1

</llo_original>
